<compile_context>
chip_gen: v7x
topology: tpu7x:2x2x1
jax: 0.10.0
libtpu: 0.0.40
codegen_flags: <defaults>
</compile_context>

<pallas_src>
import functools

import jax
import jax.numpy as jnp
from jax.experimental import pallas as pl
from jax.experimental.pallas import tpu as pltpu

SIGMA = 0.1                      # Gaussian attack strength
VMEM_LIMIT = 32 * 1024 * 1024    # explicit scoped-VMEM budget


def _pick_lane_block(n, target):
    """Largest multiple of 128 dividing n, <= target (or n itself if n <= target)."""
    if n <= target:
        return n
    for cand in range(target, 0, -128):
        if n % cand == 0:
            return cand
    return n


def _pick_sublane_block(r, target=256):
    """Largest multiple of 8 dividing r, <= target (or r itself if r <= target)."""
    if r <= target:
        return r
    for cand in range(target, 0, -8):
        if r % cand == 0:
            return cand
    return r  # fallback: full extent (correct; only matters for odd shapes)


# ---------------------------------------------------------------------------
# Fused elementwise kernel:
#   DWT(host) + DWT(secret) + embed + IDWT + noise attack + DWT + embed(rev) + IDWT
# Quarter layout: axis -3 = quarter q (ee, oe, eo, oo) for images / subband
# (LL, HL, LH, HH) for params; axes (-2, -1) = (R, 128) lane-dense slab with
# R = C*(H/2)*(W/2) / 128.
# ---------------------------------------------------------------------------
def fused_stego_kernel(hq_ref, sq_ref, wa_ref, wb_ref, iab_ref, zn_ref, zr_ref,
                       out_ref, *, sigma):
    def q4(x):                       # (4, Rb, 128) -> four (Rb, 128) slabs
        return x[0], x[1], x[2], x[3]

    def haar_fwd(x1, x2, x3, x4):
        # quarters -> (LL, HL, LH, HH); partial sums reused
        t1, t2 = x1 + x4, x2 + x3
        u1, u2 = x4 - x1, x2 - x3
        return 0.5 * (t1 + t2), 0.5 * (u1 - u2), 0.5 * (u1 + u2), 0.5 * (t1 - t2)

    def haar_inv(ll, hl, lh, hh):
        # exact inverse of haar_fwd
        p, q = ll - hl, ll + hl
        r, s = lh - hh, lh + hh
        return 0.5 * (p - r), 0.5 * (p + r), 0.5 * (q - s), 0.5 * (q + s)

    hx = q4(hq_ref[0])          # host quarters            (batch tile)
    sx = q4(sq_ref[...])        # secret quarters          (broadcast over B)
    ax = q4(wa_ref[...])        # embedding weight a       (broadcast over B)
    bx = q4(wb_ref[...])        # embedding weight b       (broadcast over B)
    ix = q4(iab_ref[...])       # precomputed 1/(a+b)      (broadcast over B)
    znx = q4(zn_ref[0])         # spatial attack noise
    zrx = q4(zr_ref[0])         # frequency-domain reverse-embedding noise

    hf = haar_fwd(*hx)                                   # DWT(host)
    sf = haar_fwd(*sx)                                   # DWT(secret)

    # forward weighted embedding (freq_noise = host - secret is unused downstream)
    cont = tuple(ax[k] * hf[k] + bx[k] * sf[k] for k in range(4))
    cimg = haar_inv(*cont)                               # container image quarters

    noised = tuple(cimg[k] + sigma * znx[k] for k in range(4))   # Gaussian attack
    rf = haar_fwd(*noised)                               # DWT(noised container)

    # reverse weighted embedding with frequency-domain noise
    rsec = tuple((rf[k] - ax[k] * zrx[k]) * ix[k] for k in range(4))
    rimg = haar_inv(*rsec)                               # recovered secret quarters

    for k in range(4):                                   # direct per-quarter stores
        out_ref[0, k] = rimg[k]


def fused_stego(hq, sq, wa, wb, iab, zn, zr, *, sigma):
    B, _, R, _ = hq.shape
    r_blk = _pick_sublane_block(R, target=256)           # ~512 KiB f32 per block
    grid = (R // r_blk, B)                               # batch innermost: bcast
                                                         # operands not re-DMA'd
    img_spec = pl.BlockSpec((1, 4, r_blk, 128), lambda ri, bi: (bi, 0, ri, 0))
    par_spec = pl.BlockSpec((4, r_blk, 128), lambda ri, bi: (0, ri, 0))

    kernel = functools.partial(fused_stego_kernel, sigma=sigma)
    return pl.pallas_call(
        kernel,
        grid=grid,
        in_specs=[img_spec, par_spec, par_spec, par_spec, par_spec,
                  img_spec, img_spec],
        out_specs=img_spec,
        out_shape=jax.ShapeDtypeStruct(hq.shape, jnp.float32),
        compiler_params=pltpu.CompilerParams(
            dimension_semantics=("parallel", "parallel"),
            vmem_limit_bytes=VMEM_LIMIT),
    )(hq, sq, wa, wb, iab, zn, zr)


# ---------------------------------------------------------------------------
# Random text embedding: bf16 MXU matmuls (f32 accumulation), large tiles.
# ---------------------------------------------------------------------------
def text_fwd_kernel(bits_ref, w_ref, out_ref):
    out_ref[...] = jnp.dot(bits_ref[...].astype(jnp.bfloat16), w_ref[...],
                           preferred_element_type=jnp.float32)


def text_fwd(bits_row, wq):
    n_bits, D = wq.shape
    tn = _pick_lane_block(D, target=8192)                # single / few grid steps
    return pl.pallas_call(
        text_fwd_kernel,
        grid=(D // tn,),
        in_specs=[pl.BlockSpec((1, n_bits), lambda j: (0, 0)),
                  pl.BlockSpec((n_bits, tn), lambda j: (0, j))],
        out_specs=pl.BlockSpec((1, tn), lambda j: (0, j)),
        out_shape=jax.ShapeDtypeStruct((1, D), jnp.float32),
        compiler_params=pltpu.CompilerParams(
            dimension_semantics=("parallel",),
            vmem_limit_bytes=VMEM_LIMIT),
    )(bits_row, wq)


def text_rev_kernel(img_ref, w_ref, out_ref, acc_ref):
    @pl.when(pl.program_id(1) == 0)
    def _():
        acc_ref[...] = jnp.zeros_like(acc_ref)

    acc_ref[...] += jax.lax.dot_general(
        img_ref[...].astype(jnp.bfloat16), w_ref[...],
        (((1,), (1,)), ((), ())), preferred_element_type=jnp.float32)

    @pl.when(pl.program_id(1) == pl.num_programs(1) - 1)
    def _():
        out_ref[0] = acc_ref[...]


def text_rev(img_flat, wq):
    B, D = img_flat.shape
    n_bits = wq.shape[0]
    tk = _pick_lane_block(D, target=4096)
    nk = D // tk
    P = 2 if (nk % 2 == 0 and nk >= 2) else 1            # parallel split for v7x 2 TCs
    kin = nk // P
    partial = pl.pallas_call(
        text_rev_kernel,
        grid=(P, kin),
        in_specs=[pl.BlockSpec((B, tk), lambda p, k: (0, p * kin + k)),
                  pl.BlockSpec((n_bits, tk), lambda p, k: (0, p * kin + k))],
        out_specs=pl.BlockSpec((1, B, n_bits), lambda p, k: (p, 0, 0)),
        out_shape=jax.ShapeDtypeStruct((P, B, n_bits), jnp.float32),
        scratch_shapes=[pltpu.VMEM((B, n_bits), jnp.float32)],
        compiler_params=pltpu.CompilerParams(
            dimension_semantics=("parallel", "arbitrary"),
            vmem_limit_bytes=VMEM_LIMIT),
    )(img_flat, wq)
    return jnp.sum(partial, axis=0)


# ---------------------------------------------------------------------------
# glue: quarter layout + params + forward
# ---------------------------------------------------------------------------
def deinterleave_quarters(x):
    """[B, C, H, W] -> [B, 4, M/128, 128], quarter q = 2*col_parity + row_parity.

    The single JAX-side layout copy in the pipeline (everything else is a free
    reshape, lives inside the fused kernel, or is absorbed into the pre-permuted
    projection matrix at init)."""
    B, C, H, W = x.shape
    h, w = H // 2, W // 2
    M = C * h * w
    xq = x.reshape(B, C, h, 2, w, 2)                # (B, c, i, r, j, s)
    xq = jnp.transpose(xq, (0, 5, 3, 1, 2, 4))      # (B, s, r, c, i, j)
    return xq.reshape(B, 4, M // 128, 128)


def init_params(key, n_bits, C, H, W):
    k1, k2, k3 = jax.random.split(key, 3)
    h, w = H // 2, W // 2
    M = C * h * w
    # TODO(synk): pad M to a multiple of 128 for arbitrary shapes.
    assert M % 128 == 0, "C*(H/2)*(W/2) must be a multiple of 128"
    R = M // 128
    wm = jax.random.normal(k1, (n_bits, C * H * W), jnp.float32) / (n_bits ** 0.5)
    # Permute projection columns into the quarter layout used by the fused kernel
    # (mathematically identical; no runtime relayout of the secret image), bf16 for
    # the MXU (accumulation stays f32).
    wq = wm.reshape(n_bits, C, h, 2, w, 2)
    wq = jnp.transpose(wq, (0, 5, 3, 1, 2, 4)).reshape(n_bits, 4 * M)
    wq = wq.astype(jnp.bfloat16)
    a = 1.0 + 0.1 * jax.random.uniform(k2, (4, R, 128), jnp.float32)
    b = 0.5 + 0.1 * jax.random.uniform(k3, (4, R, 128), jnp.float32)
    return {"W": wq, "embed_a": a, "embed_b": b, "inv_ab": 1.0 / (a + b)}


def stego_forward(params, text_bits, host_image, noise_key):
    B, C, H, W = host_image.shape
    n_bits = text_bits.shape[-1]
    M = C * (H // 2) * (W // 2)
    assert M % 128 == 0
    R = M // 128
    D = 4 * M

    # Gaussian noise (attack + reverse-embedding), generated outside the kernel.
    # TODO(synk): replace with in-kernel pltpu.prng_seed/stateful_normal on real TPU
    #             to remove these two HBM streams (not lowerable in interpret mode).
    k_img, k_freq = jax.random.split(noise_key)
    zn = jax.random.normal(k_img, (B, 4, R, 128), jnp.float32)
    zr = jax.random.normal(k_freq, (B, 4, R, 128), jnp.float32)

    # secret image (random text projection), already in quarter layout  [4, R, 128]
    secret = text_fwd(text_bits.reshape(1, n_bits), params["W"])
    sq = secret.reshape(4, R, 128)

    # host image -> quarter layout  [B, 4, R, 128]
    hq = deinterleave_quarters(host_image)

    # fused DWT / embed / IDWT / attack / DWT / embed_rev / IDWT  ->  [B, 4, R, 128]
    rq = fused_stego(hq, sq, params["embed_a"], params["embed_b"],
                     params["inv_ab"], zn, zr, sigma=SIGMA)

    # recovered text bits (transposed projection)  [B, n_bits]
    # TODO(synk): original module may threshold to hard bits; raw logits returned.
    return text_rev(rq.reshape(B, D), params["W"])


if __name__ == "__main__":
    N_BITS, C, H, W, B = 32, 4, 16, 16, 2

    key = jax.random.PRNGKey(0)
    k_params, k_bits, k_host, k_noise = jax.random.split(key, 4)

    params = init_params(k_params, N_BITS, C, H, W)
    text_bits = (jax.random.uniform(k_bits, (N_BITS,)) > 0.5).astype(jnp.float32)
    host_image = jax.random.normal(k_host, (B, C, H, W), jnp.float32)

    # sanity: bf16 projection kernel matches a plain jnp reference
    sec_k = text_fwd(text_bits.reshape(1, N_BITS), params["W"])
    sec_r = jnp.dot(text_bits.reshape(1, N_BITS).astype(jnp.bfloat16), params["W"],
                    preferred_element_type=jnp.float32)
    assert bool(jnp.allclose(sec_k, sec_r, atol=1e-3, rtol=1e-3))

    fwd = jax.jit(stego_forward)
    r_bits = fwd(params, text_bits, host_image, k_noise)
    jax.block_until_ready(r_bits)
    assert r_bits.shape == (B, N_BITS)
    assert bool(jnp.all(jnp.isfinite(r_bits)))

    print("KERNEL_OK")
</pallas_src>

<mosaic_0001>
module attributes {stable_mosaic.version = 11 : i64} {
  func.func @text_fwd_kernel(%arg0: i32, %arg1: memref<1x32xf32, #tpu.memory_space<vmem>>, %arg2: memref<32x1024xbf16, #tpu.memory_space<vmem>>, %arg3: memref<1x1024xf32, #tpu.memory_space<vmem>>) attributes {dimension_semantics = [#tpu.dimension_semantics<parallel>], iteration_bounds = array<i64: 1>, scalar_prefetch = 0 : i64, scratch_operands = 0 : i64, tpu.core_type = #tpu.core_type<tc>, window_params = [{pipeline_mode = #tpu.pipeline_mode<synchronous>, transform_indices = @transform_0, window_bounds = array<i64: 1, 32>}, {transform_indices = @transform_1, window_bounds = array<i64: 32, 1024>}, {transform_indices = @transform_2, window_bounds = array<i64: 1, 1024>}]} {
    %c0 = arith.constant 0 : index
    %c0_0 = arith.constant 0 : index
    %0 = vector.load %arg1[%c0, %c0_0] : memref<1x32xf32, #tpu.memory_space<vmem>>, vector<1x32xf32>
    %1 = arith.truncf %0 : vector<1x32xf32> to vector<1x32xbf16>
    %c0_1 = arith.constant 0 : index
    %c0_2 = arith.constant 0 : index
    %2 = vector.load %arg2[%c0_1, %c0_2] : memref<32x1024xbf16, #tpu.memory_space<vmem>>, vector<32x1024xbf16>
    %cst = arith.constant dense<0.000000e+00> : vector<1x1024xf32>
    %3 = tpu.matmul %1, %2, %cst {dimension_numbers = #tpu.dot_dimension_numbers<[1], [0], [0], [1], [0, 0, 1, 1], [], []>} : vector<1x32xbf16>, vector<32x1024xbf16>, vector<1x1024xf32> -> vector<1x1024xf32>
    %c0_3 = arith.constant 0 : index
    %c0_4 = arith.constant 0 : index
    %4 = vector.load %arg3[%c0_3, %c0_4] : memref<1x1024xf32, #tpu.memory_space<vmem>>, vector<1x1024xf32>
    tpu.vector_store %arg3[%c0_3, %c0_4], %3 {strides = array<i32>} : memref<1x1024xf32, #tpu.memory_space<vmem>>, vector<1x1024xf32>,
    return
  }
  func.func @transform_0(%arg0: i32) -> (i32, i32) {
    %c0_i32 = arith.constant 0 : i32
    %c0_i32_0 = arith.constant 0 : i32
    %c0_i32_1 = arith.constant 0 : i32
    return %c0_i32, %c0_i32_0 : i32, i32
  }
  func.func @transform_1(%arg0: i32) -> (i32, i32) {
    %c0_i32 = arith.constant 0 : i32
    %c0_i32_0 = arith.constant 0 : i32
    return %c0_i32, %arg0 : i32, i32
  }
  func.func @transform_2(%arg0: i32) -> (i32, i32) {
    %c0_i32 = arith.constant 0 : i32
    %c0_i32_0 = arith.constant 0 : i32
    return %c0_i32, %arg0 : i32, i32
  }
}

</mosaic_0001>

<llo_original>
// kernel: tpu_custom_call.1
$region0: #{tpu_custom_call.1}
  #allocation0 [shape = 'u32[]', space=smem, size = 0x4, offset = 0x4, fixed_abs, tag = 'smem constant byte address 0x4 - core index']
  #allocation1 [shape = 'u32[144,128]{1,0:T(1,128)}', space=vmem, size = 0x12000, scoped, tag = 'internal scratch']
  %s0 = inlined_call_operand.hbm [shape: f32[1,32], index: 0, kind: input, shape index: {}]
  %s1 = inlined_call_operand.hbm [shape: bf16[32,1024], index: 1, kind: input, shape index: {}]
  %s2 = inlined_call_operand.hbm [shape: f32[1,1024], index: 2, kind: output, shape index: {}]
  %s3 = sld [smem:[#allocation0]]
  $region26: #{tpu_custom_call.1} parent=0
    _
  %s5 = ssub.s32 1, %s3
  %s6 = scalar_select 0, %s5, %s3
  $region1: #{tpu_custom_call.1} parent=0
    #allocation2 [shape = 'u8[512]{0}', space=vmem, size = 0x400, scoped, tag = 'input window, operand 0, single buffered']
    #allocation3 [shape = 's32[1]{0}', space=sflag, size = 0x4, scoped, tag = 'scoped memory for tpu_custom_call.1']
    #allocation4 [shape = 's32[1]{0}', space=sflag, size = 0x4, scoped, tag = 'scoped memory for tpu_custom_call.1']
    #allocation5 [shape = 'u8[65536]{0}', space=vmem, size = 0x10000, scoped, tag = 'input window, operand 1, single buffered']
    #allocation6 [shape = 's32[1]{0}', space=sflag, size = 0x4, scoped, tag = 'scoped memory for tpu_custom_call.1']
    #allocation7 [shape = 'u8[4096]{0}', space=vmem, size = 0x1000, scoped, tag = 'output window, operand 0, single buffered']
    %7 = vsyncpa [#allocation3], 0
    %8 = vsyncpa [#allocation6], 0
    %9 = vsyncpa [#allocation4], 0
    // Predicated region
    $region2: #{tpu_custom_call.1} parent=1 // pred_check
      _
    $region3: #{tpu_custom_call.1} parent=1 // pred_check_branch
      %11 = sbr.rel (0) target = $region5
    $region4: #{tpu_custom_call.1} parent=1 // pred_region
      %s13 = ssub.s32 16, 16
      %14 = vsyncadd [#allocation3], %s13
      %s16 = sshll.u32 [#allocation2], 4
      %s17 = int_to_ptr.vmem [resolvable:$true] %s16
      %19 = dma.hbm_to_vmem [thread:$0]  %s0, 16, %s17, [#allocation3]
    $region5: #{tpu_custom_call.1} parent=1 // pred_fallthru
      _
    // Predicated region
    $region6: #{tpu_custom_call.1} parent=1 // pred_check
      _
    $region7: #{tpu_custom_call.1} parent=1 // pred_check_branch
      %21 = sbr.rel (0) target = $region9
    $region8: #{tpu_custom_call.1} parent=1 // pred_region
      %s23 = ssub.s32 2048, 2048
      %24 = vsyncadd [#allocation6], %s23
      %s25 = sshll.u32 [#allocation5], 4
      %s26 = int_to_ptr.vmem [resolvable:$true] %s25
      %31 = dma.hbm_to_vmem [thread:$0]  %s1, 2048, %s26, [#allocation6], 512, 512, 32
    $region9: #{tpu_custom_call.1} parent=1 // pred_fallthru
      _
    // Predicated region
    $region10: #{tpu_custom_call.1} parent=1 // pred_check
      _
    $region11: #{tpu_custom_call.1} parent=1 // pred_check_branch
      %33 = sbr.rel (0) target = $region13
    $region12: #{tpu_custom_call.1} parent=1 // pred_region
      %34 = dma.done [#allocation3], 16
    $region13: #{tpu_custom_call.1} parent=1 // pred_fallthru
      _
    // Predicated region
    $region14: #{tpu_custom_call.1} parent=1 // pred_check
      _
    $region15: #{tpu_custom_call.1} parent=1 // pred_check_branch
      %36 = sbr.rel (0) target = $region17
    $region16: #{tpu_custom_call.1} parent=1 // pred_region
      %37 = dma.done [#allocation6], 2048
    $region17: #{tpu_custom_call.1} parent=1 // pred_fallthru
      _
    %v39 = vld [vmem:[#allocation2] sm:$0x1]
    %v40 = vpack.c.bf16 %v39, %v39
    %v41 = vld [vmem:[#allocation5] sm:$0xff]
    %v42 = vld [vmem:[#allocation5 + $0x8] sm:$0xff]
    %v43 = vld [vmem:[#allocation5 + $0x10] sm:$0xff]
    %v44 = vld [vmem:[#allocation5 + $0x18] sm:$0xff]
    %v45 = vld [vmem:[#allocation5 + $0x20] sm:$0xff]
    %v46 = vld [vmem:[#allocation5 + $0x28] sm:$0xff]
    %v47 = vld [vmem:[#allocation5 + $0x30] sm:$0xff]
    %v48 = vld [vmem:[#allocation5 + $0x38] sm:$0xff]
    %v49 = vld [vmem:[#allocation5 + $0x40] sm:$0xff]
    %v50 = vld [vmem:[#allocation5 + $0x48] sm:$0xff]
    %v51 = vld [vmem:[#allocation5 + $0x50] sm:$0xff]
    %v52 = vld [vmem:[#allocation5 + $0x58] sm:$0xff]
    %v53 = vld [vmem:[#allocation5 + $0x60] sm:$0xff]
    %v54 = vld [vmem:[#allocation5 + $0x68] sm:$0xff]
    %v55 = vld [vmem:[#allocation5 + $0x70] sm:$0xff]
    %v56 = vld [vmem:[#allocation5 + $0x78] sm:$0xff]
    %v73 = vunpack.c.l.b16 %v41
    %v74 = vunpack.c.h.b16 %v41
    %v75 = vunpack.c.l.b16 %v42
    %v76 = vunpack.c.h.b16 %v42
    %v77 = vunpack.c.l.b16 %v43
    %v78 = vunpack.c.h.b16 %v43
    %v79 = vunpack.c.l.b16 %v44
    %v80 = vunpack.c.h.b16 %v44
    %v81 = vunpack.c.l.b16 %v45
    %v82 = vunpack.c.h.b16 %v45
    %v83 = vunpack.c.l.b16 %v46
    %v84 = vunpack.c.h.b16 %v46
    %v85 = vunpack.c.l.b16 %v47
    %v86 = vunpack.c.h.b16 %v47
    %v87 = vunpack.c.l.b16 %v48
    %v88 = vunpack.c.h.b16 %v48
    %v89 = vunpack.c.l.b16 %v49
    %v90 = vunpack.c.h.b16 %v49
    %v91 = vunpack.c.l.b16 %v50
    %v92 = vunpack.c.h.b16 %v50
    %v93 = vunpack.c.l.b16 %v51
    %v94 = vunpack.c.h.b16 %v51
    %v95 = vunpack.c.l.b16 %v52
    %v96 = vunpack.c.h.b16 %v52
    %v97 = vunpack.c.l.b16 %v53
    %v98 = vunpack.c.h.b16 %v53
    %v99 = vunpack.c.l.b16 %v54
    %v100 = vunpack.c.h.b16 %v54
    %v101 = vunpack.c.l.b16 %v55
    %v102 = vunpack.c.h.b16 %v55
    %v103 = vunpack.c.l.b16 %v56
    %v104 = vunpack.c.h.b16 %v56
    %v105 = vpack.c.b16 %v81, %v73
    %v106 = vpack.c.b16 %v82, %v74
    %v107 = vpack.c.b16 %v83, %v75
    %v108 = vpack.c.b16 %v84, %v76
    %v109 = vpack.c.b16 %v85, %v77
    %v110 = vpack.c.b16 %v86, %v78
    %v111 = vpack.c.b16 %v87, %v79
    %v112 = vpack.c.b16 %v88, %v80
    %v113 = vpack.c.b16 %v97, %v89
    %v114 = vpack.c.b16 %v98, %v90
    %v115 = vpack.c.b16 %v99, %v91
    %v116 = vpack.c.b16 %v100, %v92
    %v117 = vpack.c.b16 %v101, %v93
    %v118 = vpack.c.b16 %v102, %v94
    %v119 = vpack.c.b16 %v103, %v95
    %v120 = vpack.c.b16 %v104, %v96
    %vm137 = vcmask 261120
    %v139 = vsel %vm137, %v40, 0
    %141 = vmatprep.subr.bf16.mxu0 %v106
    %142 = vmatpush1.bf16.msra.mxu0 %v105
    %143 = vmatprep.subr.bf16.mxu0 %v114
    %144 = vmatpush1.bf16.msra.mxu0 %v113
    %145 = vmatprep.subr.bf16.mxu0 0
    %146 = vmatpush1.bf16.msra.mxu0 0
    %147 = vmatprep.subr.bf16.mxu0 0
    %148 = vmatpush1.bf16.msra.mxu0 0
    %149 = vmatprep.subr.bf16.mxu0 0
    %150 = vmatpush1.bf16.msra.mxu0 0
    %151 = vmatprep.subr.bf16.mxu0 0
    %152 = vmatpush1.bf16.msra.mxu0 0
    %153 = vmatprep.subr.bf16.mxu0 0
    %154 = vmatpush1.bf16.msra.mxu0 0
    %155 = vmatprep.subr.bf16.mxu0 0
    %156 = vmatpush1.bf16.msra.mxu0 0
    %157 = vmatprep.subr.bf16.mxu0 0
    %158 = vmatpush1.bf16.msra.mxu0 0
    %159 = vmatprep.subr.bf16.mxu0 0
    %160 = vmatpush1.bf16.msra.mxu0 0
    %161 = vmatprep.subr.bf16.mxu0 0
    %162 = vmatpush1.bf16.msra.mxu0 0
    %163 = vmatprep.subr.bf16.mxu0 0
    %164 = vmatpush1.bf16.msra.mxu0 0
    %165 = vmatprep.subr.bf16.mxu0 0
    %166 = vmatpush1.bf16.msra.mxu0 0
    %167 = vmatprep.subr.bf16.mxu0 0
    %168 = vmatpush1.bf16.msra.mxu0 0
    %169 = vmatprep.subr.bf16.mxu0 0
    %170 = vmatpush1.bf16.msra.mxu0 0
    %171 = vmatprep.subr.bf16.mxu0 0
    %172 = vmatpush1.bf16.msra.mxu0 0
    %173 = vmatprep.mubr.bf16.mxu0 0
    %174 = vmatmul.mubr.bf16.gmra.mrb[0].mxu0 %v139
    %v175 = vpop.f32.mrb[0].mxu0
    %v176 = vadd.f32 0.0, %v175
    %v177 = vpop.f32.mrb[0].mxu0
    %v178 = vadd.f32 0.0, %v177
    %v179 = vpop.f32.mrb[0].mxu0
    %v180 = vpop.f32.mrb[0].mxu0
    %181 = vdwg.mxu0
    %182 = vmatprep.subr.bf16.mxu0 %v108
    %183 = vmatpush1.bf16.msra.mxu0 %v107
    %184 = vmatprep.subr.bf16.mxu0 %v116
    %185 = vmatpush1.bf16.msra.mxu0 %v115
    %186 = vmatprep.subr.bf16.mxu0 0
    %187 = vmatpush1.bf16.msra.mxu0 0
    %188 = vmatprep.subr.bf16.mxu0 0
    %189 = vmatpush1.bf16.msra.mxu0 0
    %190 = vmatprep.subr.bf16.mxu0 0
    %191 = vmatpush1.bf16.msra.mxu0 0
    %192 = vmatprep.subr.bf16.mxu0 0
    %193 = vmatpush1.bf16.msra.mxu0 0
    %194 = vmatprep.subr.bf16.mxu0 0
    %195 = vmatpush1.bf16.msra.mxu0 0
    %196 = vmatprep.subr.bf16.mxu0 0
    %197 = vmatpush1.bf16.msra.mxu0 0
    %198 = vmatprep.subr.bf16.mxu0 0
    %199 = vmatpush1.bf16.msra.mxu0 0
    %200 = vmatprep.subr.bf16.mxu0 0
    %201 = vmatpush1.bf16.msra.mxu0 0
    %202 = vmatprep.subr.bf16.mxu0 0
    %203 = vmatpush1.bf16.msra.mxu0 0
    %204 = vmatprep.subr.bf16.mxu0 0
    %205 = vmatpush1.bf16.msra.mxu0 0
    %206 = vmatprep.subr.bf16.mxu0 0
    %207 = vmatpush1.bf16.msra.mxu0 0
    %208 = vmatprep.subr.bf16.mxu0 0
    %209 = vmatpush1.bf16.msra.mxu0 0
    %210 = vmatprep.subr.bf16.mxu0 0
    %211 = vmatpush1.bf16.msra.mxu0 0
    %212 = vmatprep.subr.bf16.mxu0 0
    %213 = vmatpush1.bf16.msra.mxu0 0
    %214 = vmatprep.mubr.bf16.mxu0 0
    %215 = vmatmul.mubr.bf16.gmra.mrb[0].mxu0 %v139
    %v216 = vpop.f32.mrb[0].mxu0
    %v217 = vadd.f32 0.0, %v216
    %v218 = vpop.f32.mrb[0].mxu0
    %v219 = vadd.f32 0.0, %v218
    %v220 = vpop.f32.mrb[0].mxu0
    %v221 = vpop.f32.mrb[0].mxu0
    %222 = vdwg.mxu0
    %223 = vmatprep.subr.bf16.mxu0 %v110
    %224 = vmatpush1.bf16.msra.mxu0 %v109
    %225 = vmatprep.subr.bf16.mxu0 %v118
    %226 = vmatpush1.bf16.msra.mxu0 %v117
    %227 = vmatprep.subr.bf16.mxu0 0
    %228 = vmatpush1.bf16.msra.mxu0 0
    %229 = vmatprep.subr.bf16.mxu0 0
    %230 = vmatpush1.bf16.msra.mxu0 0
    %231 = vmatprep.subr.bf16.mxu0 0
    %232 = vmatpush1.bf16.msra.mxu0 0
    %233 = vmatprep.subr.bf16.mxu0 0
    %234 = vmatpush1.bf16.msra.mxu0 0
    %235 = vmatprep.subr.bf16.mxu0 0
    %236 = vmatpush1.bf16.msra.mxu0 0
    %237 = vmatprep.subr.bf16.mxu0 0
    %238 = vmatpush1.bf16.msra.mxu0 0
    %239 = vmatprep.subr.bf16.mxu0 0
    %240 = vmatpush1.bf16.msra.mxu0 0
    %241 = vmatprep.subr.bf16.mxu0 0
    %242 = vmatpush1.bf16.msra.mxu0 0
    %243 = vmatprep.subr.bf16.mxu0 0
    %244 = vmatpush1.bf16.msra.mxu0 0
    %245 = vmatprep.subr.bf16.mxu0 0
    %246 = vmatpush1.bf16.msra.mxu0 0
    %247 = vmatprep.subr.bf16.mxu0 0
    %248 = vmatpush1.bf16.msra.mxu0 0
    %249 = vmatprep.subr.bf16.mxu0 0
    %250 = vmatpush1.bf16.msra.mxu0 0
    %251 = vmatprep.subr.bf16.mxu0 0
    %252 = vmatpush1.bf16.msra.mxu0 0
    %253 = vmatprep.subr.bf16.mxu0 0
    %254 = vmatpush1.bf16.msra.mxu0 0
    %255 = vmatprep.mubr.bf16.mxu0 0
    %256 = vmatmul.mubr.bf16.gmra.mrb[0].mxu0 %v139
    %v257 = vpop.f32.mrb[0].mxu0
    %v258 = vadd.f32 0.0, %v257
    %v259 = vpop.f32.mrb[0].mxu0
    %v260 = vadd.f32 0.0, %v259
    %v261 = vpop.f32.mrb[0].mxu0
    %v262 = vpop.f32.mrb[0].mxu0
    %263 = vdwg.mxu0
    %264 = vmatprep.subr.bf16.mxu0 %v112
    %265 = vmatpush1.bf16.msra.mxu0 %v111
    %266 = vmatprep.subr.bf16.mxu0 %v120
    %267 = vmatpush1.bf16.msra.mxu0 %v119
    %268 = vmatprep.subr.bf16.mxu0 0
    %269 = vmatpush1.bf16.msra.mxu0 0
    %270 = vmatprep.subr.bf16.mxu0 0
    %271 = vmatpush1.bf16.msra.mxu0 0
    %272 = vmatprep.subr.bf16.mxu0 0
    %273 = vmatpush1.bf16.msra.mxu0 0
    %274 = vmatprep.subr.bf16.mxu0 0
    %275 = vmatpush1.bf16.msra.mxu0 0
    %276 = vmatprep.subr.bf16.mxu0 0
    %277 = vmatpush1.bf16.msra.mxu0 0
    %278 = vmatprep.subr.bf16.mxu0 0
    %279 = vmatpush1.bf16.msra.mxu0 0
    %280 = vmatprep.subr.bf16.mxu0 0
    %281 = vmatpush1.bf16.msra.mxu0 0
    %282 = vmatprep.subr.bf16.mxu0 0
    %283 = vmatpush1.bf16.msra.mxu0 0
    %284 = vmatprep.subr.bf16.mxu0 0
    %285 = vmatpush1.bf16.msra.mxu0 0
    %286 = vmatprep.subr.bf16.mxu0 0
    %287 = vmatpush1.bf16.msra.mxu0 0
    %288 = vmatprep.subr.bf16.mxu0 0
    %289 = vmatpush1.bf16.msra.mxu0 0
    %290 = vmatprep.subr.bf16.mxu0 0
    %291 = vmatpush1.bf16.msra.mxu0 0
    %292 = vmatprep.subr.bf16.mxu0 0
    %293 = vmatpush1.bf16.msra.mxu0 0
    %294 = vmatprep.subr.bf16.mxu0 0
    %295 = vmatpush1.bf16.msra.mxu0 0
    %296 = vmatprep.mubr.bf16.mxu0 0
    %297 = vmatmul.mubr.bf16.gmra.mrb[0].mxu0 %v139
    %v298 = vpop.f32.mrb[0].mxu0
    %v299 = vadd.f32 0.0, %v298
    %v300 = vpop.f32.mrb[0].mxu0
    %v301 = vadd.f32 0.0, %v300
    %v302 = vpop.f32.mrb[0].mxu0
    %v303 = vpop.f32.mrb[0].mxu0
    %304 = vdwg.mxu0
    %v313 = vcombine.low %v176, %v178
    %v314 = vcombine.low %v217, %v219
    %v315 = vcombine.low %v258, %v260
    %v316 = vcombine.low %v299, %v301
    %v318 = vunpack.c.l.s4 1966171168
    %v319 = vunpack.c.0.s8 %v318
    %v320 = vlaneseq
    %v321 = vshrl.u32 %v320, 7
    %v322 = vsub.s32 %v319, %v321
    %v323 = vrot.slane %v313, %v322
    %v325 = vunpack.c.l.s4 1966171168
    %v326 = vunpack.c.0.s8 %v325
    %v327 = vlaneseq
    %v328 = vshrl.u32 %v327, 7
    %v329 = vsub.s32 %v326, %v328
    %v330 = vrot.slane %v314, %v329
    %v332 = vunpack.c.l.s4 1966171168
    %v333 = vunpack.c.0.s8 %v332
    %v334 = vlaneseq
    %v335 = vshrl.u32 %v334, 7
    %v336 = vsub.s32 %v333, %v335
    %v337 = vrot.slane %v315, %v336
    %v339 = vunpack.c.l.s4 1966171168
    %v340 = vunpack.c.0.s8 %v339
    %v341 = vlaneseq
    %v342 = vshrl.u32 %v341, 7
    %v343 = vsub.s32 %v340, %v342
    %v344 = vrot.slane %v316, %v343
    %v345 = vcombine.low %v323, %v330
    %v346 = vcombine.low %v337, %v344
    %v348 = vunpack.c.l.s4 1966171168
    %v349 = vunpack.c.0.s8 %v348
    %v350 = vlaneseq
    %v351 = vshrl.u32 %v350, 7
    %v352 = vsub.s32 %v349, %v351
    %v353 = vrot.slane %v345, %v352
    %v355 = vunpack.c.l.s4 1966171168
    %v356 = vunpack.c.0.s8 %v355
    %v357 = vlaneseq
    %v358 = vshrl.u32 %v357, 7
    %v359 = vsub.s32 %v356, %v358
    %v360 = vrot.slane %v346, %v359
    %v361 = vcombine.low %v353, %v360
    %363 = vst [vmem:[#allocation7] sm:$0xff] %v361
    // Predicated region
    $region18: #{tpu_custom_call.1} parent=1 // pred_check
      _
    $region19: #{tpu_custom_call.1} parent=1 // pred_check_branch
      %365 = sbr.rel (0) target = $region21
    $region20: #{tpu_custom_call.1} parent=1 // pred_region
      %s367 = ssub.s32 128, 128
      %368 = vsyncadd [#allocation4], %s367
      %s370 = sshll.u32 [#allocation7], 4
      %s371 = int_to_ptr.vmem [resolvable:$true] %s370
      %373 = dma.vmem_to_hbm [thread:$0]  %s371, 128, %s2, [#allocation4]
    $region21: #{tpu_custom_call.1} parent=1 // pred_fallthru
      _
    // Predicated region
    $region22: #{tpu_custom_call.1} parent=1 // pred_check
      _
    $region23: #{tpu_custom_call.1} parent=1 // pred_check_branch
      %375 = sbr.rel (0) target = $region25
    $region24: #{tpu_custom_call.1} parent=1 // pred_region
      %376 = dma.done [#allocation4], 128
    $region25: #{tpu_custom_call.1} parent=1 // pred_fallthru
      _
    %377 = vsyncpa [#allocation3], 1
    %378 = vsyncpa [#allocation6], 1
    %379 = vsyncpa [#allocation4], 1

</llo_original>
